<compile_context>
chip_gen: v6e
topology: v6e:2x2x1
jax: 0.10.0
libtpu: 0.0.40
codegen_flags: <defaults>
</compile_context>

<pallas_src>
import functools
import math

import jax
import jax.numpy as jnp
from jax.experimental import pallas as pl
from jax.experimental.pallas import tpu as pltpu

_VMEM_BUDGET = 20 * 1024 * 1024            # conservative working-set budget (v7x-safe)
_RESIDENT_WEIGHT_BYTES = 6 * 1024 * 1024   # keep whole weight in VMEM below this
_FAST_PATH_ELEMS = 1 << 18                 # M*K*N below this -> plain jnp.dot


def _round_up(x, m):
    return (x + m - 1) // m * m


def _plan(K, N):
    """Shared tiling plan so prepare_params() and pallas_linear() agree."""
    N_pad = _round_up(N, 128)
    if K * N_pad * 2 <= _RESIDENT_WEIGHT_BYTES:
        # Whole weight resident in VMEM; no K padding needed (full-dim blocks).
        return {"N_pad": N_pad, "K_pad": K, "tk": K, "resident": True}
    # Stream K in lane-aligned slices; keep the double-buffered slice bounded.
    tk = 512
    while tk > 128 and 2 * tk * N_pad * 2 > _VMEM_BUDGET // 2:
        tk //= 2
    return {"N_pad": N_pad, "K_pad": _round_up(K, tk), "tk": tk, "resident": False}


def _choose_tm(M8, tm_cap):
    """Largest M tile under tm_cap with bounded padding overshoot."""
    tm = max(8, min(tm_cap, M8) // 8 * 8)
    while tm > 8 and (_round_up(M8, tm) - M8) * 8 > M8:   # overshoot > ~12.5%
        tm = max(8, _round_up(tm // 2, 8))
    if M8 >= 256:              # >= 2 M tiles so v7x megacore can split the work
        tm = min(tm, _round_up(pl.cdiv(M8, 2), 8))
    return tm


def _linear_resident_kernel(x_ref, w_ref, b_ref, o_ref):
    """Full-K dot: x (tm, K) f32 cast in-kernel, w (K, N_pad) bf16 resident."""
    x = x_ref[...].astype(jnp.bfloat16)
    o_ref[...] = (
        jnp.dot(x, w_ref[...], preferred_element_type=jnp.float32) + b_ref[...]
    )


def _linear_stream_kernel(x_ref, w_ref, b_ref, o_ref):
    """K-streamed dot accumulating straight into the resident f32 output block."""
    k = pl.program_id(1)
    x = x_ref[...].astype(jnp.bfloat16)
    p = jnp.dot(x, w_ref[...], preferred_element_type=jnp.float32)

    @pl.when(k == 0)
    def _():
        o_ref[...] = p + b_ref[...]          # bias folded into the init

    @pl.when(k > 0)
    def _():
        o_ref[...] += p


def pallas_linear(x2d, w_prep, b_prep, N, *, force_pallas=False):
    """Compute x2d @ W + b with a tiled Pallas TPU kernel.

    x2d:    (M, K) f32 activations.
    w_prep: (K_pad, N_pad) bf16 weight from prepare_params().
    b_prep: (1, N_pad) f32 bias from prepare_params().
    N:      true output width; result is sliced back to (M, N) f32.
    """
    M, K = x2d.shape
    plan = _plan(K, N)
    N_pad, K_pad, tk = plan["N_pad"], plan["K_pad"], plan["tk"]
    assert w_prep.shape == (K_pad, N_pad), (w_prep.shape, (K_pad, N_pad))
    assert b_prep.shape == (1, N_pad), b_prep.shape

    if not force_pallas and M * K * N < _FAST_PATH_ELEMS:
        # Launch + padding overhead dominates tiny problems; let XLA fuse it.
        return x2d @ w_prep[:K, :N].astype(jnp.float32) + b_prep[0, :N]

    M8 = _round_up(M, 8)

    # VMEM accounting (double-buffered BlockSpec inputs/outputs, f32 x tiles).
    if plan["resident"]:
        fixed = 2 * K_pad * N_pad * 2 + 2 * 8 * N_pad * 4    # weight + bias bufs
        per_row = 2 * K_pad * 4 + 2 * N_pad * 4              # x(f32) + out(f32)
    else:
        fixed = 2 * tk * N_pad * 2 + 2 * 8 * N_pad * 4
        per_row = 2 * tk * 4 + 2 * N_pad * 4
    avail = max(_VMEM_BUDGET - fixed, 8 * per_row)
    tm_cap = max(8, min(512, (avail // per_row) // 8 * 8))
    tm = _choose_tm(M8, tm_cap)
    M_pad = _round_up(M, tm)

    footprint = fixed + tm * per_row
    vmem_limit = min(32 * 1024 * 1024, max(4 * 1024 * 1024, footprint * 3 // 2))

    # Pad activations only when alignment requires it (zero-width pad is free).
    x_p = jnp.pad(x2d, ((0, M_pad - M), (0, K_pad - K)))

    if plan["resident"]:
        out_p = pl.pallas_call(
            _linear_resident_kernel,
            out_shape=jax.ShapeDtypeStruct((M_pad, N_pad), jnp.float32),
            grid=(M_pad // tm,),
            in_specs=[
                pl.BlockSpec((tm, K_pad), lambda i: (i, 0)),       # x tile (f32)
                pl.BlockSpec((K_pad, N_pad), lambda i: (0, 0)),    # weight, resident
                pl.BlockSpec((1, N_pad), lambda i: (0, 0)),        # bias, resident
            ],
            out_specs=pl.BlockSpec((tm, N_pad), lambda i: (i, 0)),
            compiler_params=pltpu.CompilerParams(
                dimension_semantics=("parallel",),
                vmem_limit_bytes=vmem_limit,
            ),
        )(x_p, w_prep, b_prep)
    else:
        out_p = pl.pallas_call(
            _linear_stream_kernel,
            out_shape=jax.ShapeDtypeStruct((M_pad, N_pad), jnp.float32),
            grid=(M_pad // tm, K_pad // tk),
            in_specs=[
                pl.BlockSpec((tm, tk), lambda i, k: (i, k)),       # x tile (f32)
                pl.BlockSpec((tk, N_pad), lambda i, k: (k, 0)),    # weight K-slice
                pl.BlockSpec((1, N_pad), lambda i, k: (0, 0)),     # bias, resident
            ],
            out_specs=pl.BlockSpec((tm, N_pad), lambda i, k: (i, 0)),
            compiler_params=pltpu.CompilerParams(
                dimension_semantics=("parallel", "arbitrary"),
                vmem_limit_bytes=vmem_limit,
            ),
        )(x_p, w_prep, b_prep)

    return out_p[:M, :N]


@functools.partial(jax.jit, static_argnames=("B", "C", "T_out", "force_pallas"))
def model_forward(x, w_prep, b_prep, *, B, C, T_out, force_pallas=False):
    """Forward pass equivalent to Model(enable_channel_independence=True).

    x: (B*C, T_p, D)  ->  (B, T_out, C)
    """
    BC = x.shape[0]
    assert BC == B * C
    x2d = x.reshape(BC, -1)                    # Flatten(start_dim=1)
    # Dropout: identity (eval mode).
    y = pallas_linear(x2d, w_prep, b_prep, T_out, force_pallas=force_pallas)
    y = y.reshape(B, C, T_out)                 # '(B C) T_out -> B T_out C'
    return jnp.transpose(y, (0, 2, 1))


def init_linear_params(key, in_features, out_features):
    """Deterministic init matching nn.Linear default (uniform +-1/sqrt(in))."""
    kw, kb = jax.random.split(key)
    bound = 1.0 / math.sqrt(in_features)
    weight = jax.random.uniform(
        kw, (out_features, in_features), jnp.float32, -bound, bound)
    bias = jax.random.uniform(
        kb, (out_features,), jnp.float32, -bound, bound)
    return weight, bias


def prepare_params(weight, bias):
    """One-time layout prep: transpose to (K, N), cast bf16, pad to (K_pad, N_pad)."""
    weight = jnp.asarray(weight, jnp.float32)      # PyTorch (N, K) layout
    bias = jnp.asarray(bias, jnp.float32)
    N, K = weight.shape
    plan = _plan(K, N)
    w_prep = jnp.pad(weight.T.astype(jnp.bfloat16),
                     ((0, plan["K_pad"] - K), (0, plan["N_pad"] - N)))
    b_prep = jnp.pad(bias, (0, plan["N_pad"] - N)).reshape(1, plan["N_pad"])
    return w_prep, b_prep


if __name__ == "__main__":
    # Small shapes consistent with the module's forward (channel independence).
    B, C, T_p, D, T_out = 2, 4, 8, 16, 32
    key = jax.random.PRNGKey(0)
    kx, kp = jax.random.split(key)

    # Channel-independent input: (B*C, T_p, D)
    x = jax.random.normal(kx, (B * C, T_p, D), dtype=jnp.float32)
    weight, bias = init_linear_params(kp, T_p * D, T_out)   # PyTorch (N, K) layout
    w_prep, b_prep = prepare_params(weight, bias)           # one-time layout prep

    # force_pallas=True so the Pallas kernel (not the tiny-problem fast path)
    # is exercised at these demo shapes.
    out = model_forward(x, w_prep, b_prep, B=B, C=C, T_out=T_out,
                        force_pallas=True)
    out = jax.block_until_ready(out)

    # Correctness check against a bf16-weight-consistent plain-JAX reference.
    x2d = x.reshape(B * C, -1)
    w_kn = weight.T.astype(jnp.bfloat16).astype(jnp.float32)
    ref2d = x2d.astype(jnp.bfloat16).astype(jnp.float32) @ w_kn + bias
    ref = jnp.transpose(ref2d.reshape(B, C, T_out), (0, 2, 1))

    assert out.shape == (B, T_out, C), out.shape
    assert jnp.allclose(out, ref, atol=2e-3, rtol=2e-3), (
        float(jnp.max(jnp.abs(out - ref))))

    print("KERNEL_OK")
</pallas_src>

<mosaic_0001>
module attributes {stable_mosaic.version = 11 : i64} {
  func.func @_linear_resident_kernel(%arg0: i32, %arg1: memref<8x128xf32, #tpu.memory_space<vmem>>, %arg2: memref<128x128xbf16, #tpu.memory_space<vmem>>, %arg3: memref<1x128xf32, #tpu.memory_space<vmem>>, %arg4: memref<8x128xf32, #tpu.memory_space<vmem>>) attributes {dimension_semantics = [#tpu.dimension_semantics<parallel>], iteration_bounds = array<i64: 1>, scalar_prefetch = 0 : i64, scratch_operands = 0 : i64, tpu.core_type = #tpu.core_type<tc>, window_params = [{transform_indices = @transform_0, window_bounds = array<i64: 8, 128>}, {pipeline_mode = #tpu.pipeline_mode<synchronous>, transform_indices = @transform_1, window_bounds = array<i64: 128, 128>}, {pipeline_mode = #tpu.pipeline_mode<synchronous>, transform_indices = @transform_2, window_bounds = array<i64: 1, 128>}, {transform_indices = @transform_3, window_bounds = array<i64: 8, 128>}]} {
    %c0 = arith.constant 0 : index
    %c0_0 = arith.constant 0 : index
    %0 = vector.load %arg1[%c0, %c0_0] : memref<8x128xf32, #tpu.memory_space<vmem>>, vector<8x128xf32>
    %1 = arith.truncf %0 : vector<8x128xf32> to vector<8x128xbf16>
    %c0_1 = arith.constant 0 : index
    %c0_2 = arith.constant 0 : index
    %2 = vector.load %arg2[%c0_1, %c0_2] : memref<128x128xbf16, #tpu.memory_space<vmem>>, vector<128x128xbf16>
    %cst = arith.constant dense<0.000000e+00> : vector<8x128xf32>
    %3 = tpu.matmul %1, %2, %cst {dimension_numbers = #tpu.dot_dimension_numbers<[1], [0], [0], [1], [0, 0, 1, 1], [], []>} : vector<8x128xbf16>, vector<128x128xbf16>, vector<8x128xf32> -> vector<8x128xf32>
    %c0_3 = arith.constant 0 : index
    %c0_4 = arith.constant 0 : index
    %4 = vector.load %arg3[%c0_3, %c0_4] : memref<1x128xf32, #tpu.memory_space<vmem>>, vector<1x128xf32>
    %5 = vector.broadcast %4 : vector<1x128xf32> to vector<8x128xf32>
    %6 = arith.addf %3, %5 : vector<8x128xf32>
    %c0_5 = arith.constant 0 : index
    %c0_6 = arith.constant 0 : index
    %7 = vector.load %arg4[%c0_5, %c0_6] : memref<8x128xf32, #tpu.memory_space<vmem>>, vector<8x128xf32>
    tpu.vector_store %arg4[%c0_5, %c0_6], %6 {strides = array<i32>} : memref<8x128xf32, #tpu.memory_space<vmem>>, vector<8x128xf32>,
    return
  }
  func.func @transform_0(%arg0: i32) -> (i32, i32) {
    %c0_i32 = arith.constant 0 : i32
    %c0_i32_0 = arith.constant 0 : i32
    return %arg0, %c0_i32 : i32, i32
  }
  func.func @transform_1(%arg0: i32) -> (i32, i32) {
    %c0_i32 = arith.constant 0 : i32
    %c0_i32_0 = arith.constant 0 : i32
    %c0_i32_1 = arith.constant 0 : i32
    return %c0_i32, %c0_i32_0 : i32, i32
  }
  func.func @transform_2(%arg0: i32) -> (i32, i32) {
    %c0_i32 = arith.constant 0 : i32
    %c0_i32_0 = arith.constant 0 : i32
    %c0_i32_1 = arith.constant 0 : i32
    return %c0_i32, %c0_i32_0 : i32, i32
  }
  func.func @transform_3(%arg0: i32) -> (i32, i32) {
    %c0_i32 = arith.constant 0 : i32
    %c0_i32_0 = arith.constant 0 : i32
    return %arg0, %c0_i32 : i32, i32
  }
}

</mosaic_0001>

<llo_original>
// kernel: model_forward.1
$region0: #{model_forward.1}
  #allocation0 [shape = 'u32[]', space=smem, size = 0x4, offset = 0x4, fixed_abs, tag = 'smem constant byte address 0x4 - core index']
  #allocation1 [shape = 'u32[144,128]{1,0:T(1,128)}', space=vmem, size = 0x12000, scoped, tag = 'internal scratch']
  %s0 = inlined_call_operand.vmem [shape: f32[8,128], index: 0, kind: input, shape index: {}]
  %s1 = inlined_call_operand.vmem [shape: bf16[128,128], index: 1, kind: input, shape index: {}]
  %s2 = inlined_call_operand.vmem [shape: f32[1,128], index: 2, kind: input, shape index: {}]
  %s3 = inlined_call_operand.hbm [shape: f32[8,128], index: 3, kind: output, shape index: {}]
  %s4 = sld [smem:[#allocation0]]
  $region22: #{model_forward.1} parent=0
    _
  %s6 = ssub.s32 1, %s4
  %s7 = scalar_select 0, %s6, %s4
  $region1: #{model_forward.1} parent=0
    #allocation2 [shape = 'u8[4096]{0}', space=vmem, size = 0x1000, scoped, tag = 'output window, operand 0, single buffered']
    #allocation3 [shape = 's32[1]{0}', space=sflag, size = 0x4, scoped, tag = 'scoped memory for model_forward.1']
    %8 = vsyncpa [#allocation3], 0
    // Predicated region
    $region2: #{model_forward.1} parent=1 // pred_check
      _
    $region3: #{model_forward.1} parent=1 // pred_check_branch
      %10 = sbr.rel (0) target = $region5
    $region4: #{model_forward.1} parent=1 // pred_region
      _
    $region5: #{model_forward.1} parent=1 // pred_fallthru
      _
    // Predicated region
    $region6: #{model_forward.1} parent=1 // pred_check
      _
    $region7: #{model_forward.1} parent=1 // pred_check_branch
      %12 = sbr.rel (0) target = $region9
    $region8: #{model_forward.1} parent=1 // pred_region
      _
    $region9: #{model_forward.1} parent=1 // pred_fallthru
      _
    // Predicated region
    $region10: #{model_forward.1} parent=1 // pred_check
      _
    $region11: #{model_forward.1} parent=1 // pred_check_branch
      %14 = sbr.rel (0) target = $region13
    $region12: #{model_forward.1} parent=1 // pred_region
      _
    $region13: #{model_forward.1} parent=1 // pred_fallthru
      _
    %v16 = vld [vmem:[%s0] sm:$0xff]
    %v17 = vpack.c.bf16 %v16, %v16
    %v18 = vld [vmem:[%s1] sm:$0xf]
    %v19 = vld [vmem:[%s1 + $0x4] sm:$0xf]
    %v20 = vld [vmem:[%s1 + $0x8] sm:$0xf]
    %v21 = vld [vmem:[%s1 + $0xc] sm:$0xf]
    %v22 = vld [vmem:[%s1 + $0x10] sm:$0xf]
    %v23 = vld [vmem:[%s1 + $0x14] sm:$0xf]
    %v24 = vld [vmem:[%s1 + $0x18] sm:$0xf]
    %v25 = vld [vmem:[%s1 + $0x1c] sm:$0xf]
    %v26 = vld [vmem:[%s1 + $0x20] sm:$0xf]
    %v27 = vld [vmem:[%s1 + $0x24] sm:$0xf]
    %v28 = vld [vmem:[%s1 + $0x28] sm:$0xf]
    %v29 = vld [vmem:[%s1 + $0x2c] sm:$0xf]
    %v30 = vld [vmem:[%s1 + $0x30] sm:$0xf]
    %v31 = vld [vmem:[%s1 + $0x34] sm:$0xf]
    %v32 = vld [vmem:[%s1 + $0x38] sm:$0xf]
    %v33 = vld [vmem:[%s1 + $0x3c] sm:$0xf]
    %v34 = vld [vmem:[%s2] sm:$0x1]
    %v36 = vlaneseq
    %v37 = vshrl.u32 %v36, 7
    %v38 = vsub.s32 0, %v37
    %v39 = vrot.slane %v34, %v38
    %v57 = vunpack.c.l.b16 %v18
    %v58 = vunpack.c.l.b16 %v19
    %v59 = vunpack.c.l.b16 %v20
    %v60 = vunpack.c.l.b16 %v21
    %v61 = vunpack.c.l.b16 %v22
    %v62 = vunpack.c.l.b16 %v23
    %v63 = vunpack.c.l.b16 %v24
    %v64 = vunpack.c.l.b16 %v25
    %v65 = vunpack.c.l.b16 %v26
    %v66 = vunpack.c.l.b16 %v27
    %v67 = vunpack.c.l.b16 %v28
    %v68 = vunpack.c.l.b16 %v29
    %v69 = vunpack.c.l.b16 %v30
    %v70 = vunpack.c.l.b16 %v31
    %v71 = vunpack.c.l.b16 %v32
    %v72 = vunpack.c.l.b16 %v33
    %v73 = vpack.c.b16 %v58, %v57
    %v74 = vpack.c.b16 %v60, %v59
    %v75 = vpack.c.b16 %v62, %v61
    %v76 = vpack.c.b16 %v64, %v63
    %v77 = vpack.c.b16 %v66, %v65
    %v78 = vpack.c.b16 %v68, %v67
    %v79 = vpack.c.b16 %v70, %v69
    %v80 = vpack.c.b16 %v72, %v71
    %89 = vmatprep.subr.bf16.mxu0 0
    %90 = vmatpush1.bf16.msra.mxu0 %v80
    %91 = vmatprep.subr.bf16.mxu0 0
    %92 = vmatpush1.bf16.msra.mxu0 %v79
    %93 = vmatprep.subr.bf16.mxu0 0
    %94 = vmatpush1.bf16.msra.mxu0 %v78
    %95 = vmatprep.subr.bf16.mxu0 0
    %96 = vmatpush1.bf16.msra.mxu0 %v77
    %97 = vmatprep.subr.bf16.mxu0 0
    %98 = vmatpush1.bf16.msra.mxu0 %v76
    %99 = vmatprep.subr.bf16.mxu0 0
    %100 = vmatpush1.bf16.msra.mxu0 %v75
    %101 = vmatprep.subr.bf16.mxu0 0
    %102 = vmatpush1.bf16.msra.mxu0 %v74
    %103 = vmatprep.subr.bf16.mxu0 0
    %104 = vmatpush1.bf16.msra.mxu0 %v73
    %105 = vmatprep.subr.bf16.mxu0 0
    %106 = vmatpush2.bf16.msra.mxu0 0
    %107 = vmatprep.subr.bf16.mxu0 0
    %108 = vmatpush2.bf16.msra.mxu0 0
    %109 = vmatprep.subr.bf16.mxu0 0
    %110 = vmatpush2.bf16.msra.mxu0 0
    %111 = vmatprep.subr.bf16.mxu0 0
    %112 = vmatpush2.bf16.msra.mxu0 0
    %113 = vmatprep.subr.bf16.mxu0 0
    %114 = vmatpush2.bf16.msra.mxu0 0
    %115 = vmatprep.subr.bf16.mxu0 0
    %116 = vmatpush2.bf16.msra.mxu0 0
    %117 = vmatprep.subr.bf16.mxu0 0
    %118 = vmatpush2.bf16.msra.mxu0 0
    %119 = vmatprep.subr.bf16.mxu0 0
    %120 = vmatpush2.bf16.msra.mxu0 0
    %121 = vmatprep.mubr.bf16.mxu0 0
    %122 = vmatmul.mubr.bf16.gmra.mxu0 %v17
    %v123 = vpop.f32.mrf.mxu0
    %v124 = vadd.f32 %v39, %v123
    %v125 = vpop.f32.mrf.mxu0
    %v126 = vpop.f32.mrf.mxu0
    %v127 = vpop.f32.mrf.mxu0
    %128 = vdwg.mxu0
    %129 = vst [vmem:[#allocation2] sm:$0xff] %v124
    // Predicated region
    $region14: #{model_forward.1} parent=1 // pred_check
      _
    $region15: #{model_forward.1} parent=1 // pred_check_branch
      %131 = sbr.rel (0) target = $region17
    $region16: #{model_forward.1} parent=1 // pred_region
      %s133 = ssub.s32 128, 128
      %134 = vsyncadd [#allocation3], %s133
      %s136 = sshll.u32 [#allocation2], 4
      %s137 = int_to_ptr.vmem [resolvable:$true] %s136
      %139 = dma.vmem_to_hbm [thread:$0]  %s137, 128, %s3, [#allocation3]
    $region17: #{model_forward.1} parent=1 // pred_fallthru
      _
    // Predicated region
    $region18: #{model_forward.1} parent=1 // pred_check
      _
    $region19: #{model_forward.1} parent=1 // pred_check_branch
      %141 = sbr.rel (0) target = $region21
    $region20: #{model_forward.1} parent=1 // pred_region
      %142 = dma.done [#allocation3], 128
    $region21: #{model_forward.1} parent=1 // pred_fallthru
      _
    %143 = vsyncpa [#allocation3], 1

</llo_original>
